<compile_context>
chip_gen: v6e
topology: v6e:2x2x1
jax: 0.10.0
libtpu: 0.0.40
codegen_flags: <defaults>
</compile_context>

<pallas_src>
import functools

import jax
import jax.numpy as jnp
from jax.experimental import pallas as pl
from jax.experimental.pallas import tpu as pltpu

_LANE = 128
_MAX_CHUNKS = 64          # cap on unrolled 128-lane chunks folded per grid step


def _channel_attention_kernel(x_ref, w1t_ref, w2t_ref, o_ref, sum_acc, max_acc,
                              *, hw, tile, acc_lanes, n_steps, bb, inv_hw):
    # x_ref   : (bb, C, tile)      lane slab of bb batch elements
    # w1t_ref : (C, MID)           fc1.weight transposed (pooled @ w1t)
    # w2t_ref : (MID, C)           fc2.weight transposed (hidden @ w2t)
    # o_ref   : (bb, 1, C)         lane-dense sigmoid gate for this batch block
    # sum_acc / max_acc : (bb, C, acc_lanes) f32 running accumulators (scratch)
    h = pl.program_id(1)
    last = n_steps - 1

    @pl.when(h == 0)
    def _init():
        sum_acc[...] = jnp.zeros(sum_acc.shape, sum_acc.dtype)
        max_acc[...] = jnp.full(max_acc.shape, -jnp.inf, max_acc.dtype)

    def _fold(num_valid):
        # num_valid is a trace-time int: in-bounds lanes of this tile.
        n_full = num_valid // acc_lanes
        for k in range(n_full):                      # bare VALU add / max
            c = x_ref[:, :, k * acc_lanes:(k + 1) * acc_lanes].astype(jnp.float32)
            sum_acc[...] = sum_acc[...] + c
            max_acc[...] = jnp.maximum(max_acc[...], c)
        p = num_valid % acc_lanes
        if p:                                        # single partial chunk (ragged tail)
            k = n_full
            c = x_ref[:, :, k * acc_lanes:(k + 1) * acc_lanes].astype(jnp.float32)
            lane = jax.lax.broadcasted_iota(jnp.int32, c.shape, dimension=2)
            valid = lane < p
            sum_acc[...] = sum_acc[...] + jnp.where(valid, c, 0.0)
            max_acc[...] = jnp.maximum(max_acc[...], jnp.where(valid, c, -jnp.inf))

    rem = hw - (n_steps - 1) * tile                  # valid lanes in the last step
    if rem == tile:
        _fold(tile)                                  # no raggedness: never mask
    else:
        if n_steps > 1:
            @pl.when(h < last)
            def _steady():
                _fold(tile)                          # steady state: no masking

        @pl.when(h == last)
        def _ragged_tail():
            _fold(rem)                               # mask only on the last tile

    @pl.when(h == last)
    def _finalize():
        avg = jnp.sum(sum_acc[...], axis=-1) * inv_hw          # (bb, C)
        mx = jnp.max(max_acc[...], axis=-1)                    # (bb, C)
        pooled = jnp.concatenate([avg, mx], axis=0)            # (2*bb, C) lane-dense
        w1t = w1t_ref[...].astype(jnp.float32)                 # (C, MID)
        w2t = w2t_ref[...].astype(jnp.float32)                 # (MID, C)
        h1 = jnp.maximum(
            jnp.dot(pooled, w1t, preferred_element_type=jnp.float32), 0.0)   # (2*bb, MID)
        h2 = jnp.dot(h1, w2t, preferred_element_type=jnp.float32)            # (2*bb, C)
        logits = h2[:bb, :] + h2[bb:, :]                                      # (bb, C)
        o_ref[...] = jax.nn.sigmoid(logits)[:, None, :].astype(o_ref.dtype)


def _vmem_budget():
    """(per-input-block byte budget, vmem_limit_bytes), generation-aware."""
    try:
        cap = pltpu.get_tpu_info().vmem_capacity_bytes
    except Exception:
        cap = None
    if cap is not None and cap >= 96 * 1024 * 1024:       # v5e / v6e: 128 MiB VMEM
        return 6 * 1024 * 1024, 64 * 1024 * 1024
    if cap is not None:                                    # v7x-class: 64 MiB per TC
        return 2 * 1024 * 1024, 40 * 1024 * 1024
    return 2 * 1024 * 1024, 32 * 1024 * 1024               # unknown: conservative


def _choose_bb(b, cap=8):
    """Largest divisor of b not exceeding cap (amortizes the per-batch finalize)."""
    for bb in range(min(b, cap), 0, -1):
        if b % bb == 0:
            return bb
    return 1


def _choose_hw_tiling(hw, c, bb, itemsize, budget_bytes, max_tile_lanes=None):
    """Return (tile, n_steps, acc_lanes).  tile is a multiple of 128 (or == hw
    when hw < 128), so the (8,128) rule holds; raggedness is masked in-kernel."""
    if hw < _LANE:
        return hw, 1, hw
    row_bytes = max(1, bb * c * itemsize)
    lanes = (budget_bytes // row_bytes) // _LANE * _LANE
    lanes = max(_LANE, min(lanes, _MAX_CHUNKS * _LANE))
    if max_tile_lanes is not None:
        lanes = max(_LANE, min(lanes, (max_tile_lanes // _LANE) * _LANE))
    hw_ceil = pl.cdiv(hw, _LANE) * _LANE
    tile = min(lanes, hw_ceil)
    return tile, pl.cdiv(hw, tile), _LANE


def channel_attention(x_nchw, w1, w2, *, max_tile_lanes=None, batch_block=8):
    """x_nchw: (B, C, H, W); w1 = fc1.weight[:, :, 0, 0] -> (MID, C);
       w2 = fc2.weight[:, :, 0, 0] -> (C, MID).  Returns (B, C, 1, 1) float32."""
    B, C, H, W = x_nchw.shape
    HW = H * W
    MID = w1.shape[0]
    assert w1.shape == (MID, C) and w2.shape == (C, MID)

    x = x_nchw.reshape(B, C, HW)          # view-style reshape, no padding pass
    w1t = jnp.transpose(w1)               # (C, MID)
    w2t = jnp.transpose(w2)               # (MID, C)

    bb = _choose_bb(B, batch_block)
    budget, vmem_limit = _vmem_budget()
    tile, n_steps, acc_lanes = _choose_hw_tiling(
        HW, C, bb, x.dtype.itemsize, budget, max_tile_lanes)

    kernel = functools.partial(_channel_attention_kernel,
                               hw=HW, tile=tile, acc_lanes=acc_lanes,
                               n_steps=n_steps, bb=bb, inv_hw=1.0 / HW)

    cost = pl.CostEstimate(
        flops=int(2 * B * C * HW + 8 * B * C * MID),
        transcendentals=int(B * C),
        bytes_accessed=int(B * C * HW * x.dtype.itemsize
                           + 2 * C * MID * w1.dtype.itemsize + B * C * 4),
    )

    out = pl.pallas_call(
        kernel,
        out_shape=jax.ShapeDtypeStruct((B, 1, C), jnp.float32),
        grid_spec=pltpu.PrefetchScalarGridSpec(
            num_scalar_prefetch=0,
            grid=(B // bb, n_steps),                       # batch blocks parallel, HW reduction last
            in_specs=[
                pl.BlockSpec((bb, C, tile), lambda b, h: (b, 0, h)),
                pl.BlockSpec((C, MID), lambda b, h: (0, 0)),   # resident weights
                pl.BlockSpec((MID, C), lambda b, h: (0, 0)),
            ],
            out_specs=pl.BlockSpec((bb, 1, C), lambda b, h: (b, 0, 0)),
            scratch_shapes=[pltpu.VMEM((bb, C, acc_lanes), jnp.float32),   # running sum
                            pltpu.VMEM((bb, C, acc_lanes), jnp.float32)],  # running max
        ),
        compiler_params=pltpu.CompilerParams(
            dimension_semantics=("parallel", "arbitrary"),
            vmem_limit_bytes=vmem_limit,
        ),
        cost_estimate=cost,
    )(x, w1t, w2t)

    return jnp.transpose(out, (0, 2, 1))[:, :, :, None]    # (B, C, 1, 1)


def channel_attention_ref(x_nchw, w1, w2):
    # Pure-JAX reference (torch weight layout: w1 (MID, C), w2 (C, MID)).
    avg = jnp.mean(x_nchw, axis=(2, 3))
    mx = jnp.max(x_nchw, axis=(2, 3))
    a = jnp.maximum(avg @ w1.T, 0.0) @ w2.T
    m = jnp.maximum(mx @ w1.T, 0.0) @ w2.T
    return jax.nn.sigmoid(a + m)[:, :, None, None]


if __name__ == "__main__":
    key = jax.random.PRNGKey(0)

    # Case 1: module defaults (reduction_ratio=16); single HW step, bb=2.
    B, C, H, W = 2, 64, 16, 16
    MID = C // 16
    k1, k2, k3, key = jax.random.split(key, 4)
    x = jax.random.normal(k1, (B, C, H, W), dtype=jnp.float32)
    w1 = jax.random.normal(k2, (MID, C), dtype=jnp.float32) * 0.1    # fc1.weight
    w2 = jax.random.normal(k3, (C, MID), dtype=jnp.float32) * 0.1    # fc2.weight
    out = jax.block_until_ready(channel_attention(x, w1, w2))
    ref = channel_attention_ref(x, w1, w2)
    assert out.shape == (B, C, 1, 1)
    assert jnp.allclose(out, ref, atol=1e-3, rtol=1e-3), "case 1 mismatch vs reference"

    # Case 2: multi-step ragged HW (324 = 2*128 + 68) handled in-kernel, no pad.
    B2, C2, H2, W2 = 2, 32, 18, 18
    MID2 = C2 // 8
    k1, k2, k3, key = jax.random.split(key, 4)
    x2 = jax.random.normal(k1, (B2, C2, H2, W2), dtype=jnp.float32)
    w1b = jax.random.normal(k2, (MID2, C2), dtype=jnp.float32) * 0.1
    w2b = jax.random.normal(k3, (C2, MID2), dtype=jnp.float32) * 0.1
    out2 = jax.block_until_ready(channel_attention(x2, w1b, w2b, max_tile_lanes=128))
    ref2 = channel_attention_ref(x2, w1b, w2b)
    assert out2.shape == (B2, C2, 1, 1)
    assert jnp.allclose(out2, ref2, atol=1e-3, rtol=1e-3), "case 2 mismatch vs reference"

    # Case 3: HW < 128 (single narrow tile) and an odd batch (bb=3).
    B3, C3, H3, W3 = 3, 16, 7, 7
    MID3 = C3 // 4
    k1, k2, k3, key = jax.random.split(key, 4)
    x3 = jax.random.normal(k1, (B3, C3, H3, W3), dtype=jnp.float32)
    w1c = jax.random.normal(k2, (MID3, C3), dtype=jnp.float32) * 0.1
    w2c = jax.random.normal(k3, (C3, MID3), dtype=jnp.float32) * 0.1
    out3 = jax.block_until_ready(channel_attention(x3, w1c, w2c))
    ref3 = channel_attention_ref(x3, w1c, w2c)
    assert out3.shape == (B3, C3, 1, 1)
    assert jnp.allclose(out3, ref3, atol=1e-3, rtol=1e-3), "case 3 mismatch vs reference"

    print("KERNEL_OK")
</pallas_src>

<mosaic_0001>
module attributes {stable_mosaic.version = 11 : i64} {
  func.func @_channel_attention_kernel(%arg0: i32, %arg1: i32, %arg2: memref<2x64x256xf32, #tpu.memory_space<vmem>>, %arg3: memref<64x4xf32, #tpu.memory_space<vmem>>, %arg4: memref<4x64xf32, #tpu.memory_space<vmem>>, %arg5: memref<2x1x64xf32, #tpu.memory_space<vmem>>, %arg6: memref<2x64x128xf32, #tpu.memory_space<vmem>>, %arg7: memref<2x64x128xf32, #tpu.memory_space<vmem>>) attributes {dimension_semantics = [#tpu.dimension_semantics<parallel>, #tpu.dimension_semantics<arbitrary>], iteration_bounds = array<i64: 1, 1>, scalar_prefetch = 0 : i64, scratch_operands = 2 : i64, tpu.core_type = #tpu.core_type<tc>, window_params = [{transform_indices = @transform_0, window_bounds = array<i64: 2, 64, 256>}, {pipeline_mode = #tpu.pipeline_mode<synchronous>, transform_indices = @transform_1, window_bounds = array<i64: 64, 4>}, {pipeline_mode = #tpu.pipeline_mode<synchronous>, transform_indices = @transform_2, window_bounds = array<i64: 4, 64>}, {transform_indices = @transform_3, window_bounds = array<i64: 2, 1, 64>}]} {
    %c0_i32 = arith.constant 0 : i32
    %0 = arith.cmpi eq, %arg1, %c0_i32 : i32
    %1 = arith.extui %0 : i1 to i32
    %c0_i32_0 = arith.constant 0 : i32
    %2 = arith.cmpi ne, %1, %c0_i32_0 : i32
    scf.if %2 {
      %cst = arith.constant 0.000000e+00 : f32
      %20 = vector.broadcast %cst : f32 to vector<2x64x128xf32>
      %c0_31 = arith.constant 0 : index
      %c0_32 = arith.constant 0 : index
      %c0_33 = arith.constant 0 : index
      %21 = vector.load %arg6[%c0_31, %c0_32, %c0_33] : memref<2x64x128xf32, #tpu.memory_space<vmem>>, vector<2x64x128xf32>
      tpu.vector_store %arg6[%c0_31, %c0_32, %c0_33], %20 {strides = array<i32>} : memref<2x64x128xf32, #tpu.memory_space<vmem>>, vector<2x64x128xf32>,
      %cst_34 = arith.constant 0xFF800000 : f32
      %22 = vector.broadcast %cst_34 : f32 to vector<2x64x128xf32>
      %c0_35 = arith.constant 0 : index
      %c0_36 = arith.constant 0 : index
      %c0_37 = arith.constant 0 : index
      %23 = vector.load %arg7[%c0_35, %c0_36, %c0_37] : memref<2x64x128xf32, #tpu.memory_space<vmem>>, vector<2x64x128xf32>
      tpu.vector_store %arg7[%c0_35, %c0_36, %c0_37], %22 {strides = array<i32>} : memref<2x64x128xf32, #tpu.memory_space<vmem>>, vector<2x64x128xf32>,
    } else {
    }
    %c0 = arith.constant 0 : index
    %c0_1 = arith.constant 0 : index
    %c0_2 = arith.constant 0 : index
    %3 = vector.load %arg2[%c0, %c0_1, %c0_2] : memref<2x64x256xf32, #tpu.memory_space<vmem>>, vector<2x64x128xf32>
    %c0_3 = arith.constant 0 : index
    %c0_4 = arith.constant 0 : index
    %c0_5 = arith.constant 0 : index
    %4 = vector.load %arg6[%c0_3, %c0_4, %c0_5] : memref<2x64x128xf32, #tpu.memory_space<vmem>>, vector<2x64x128xf32>
    %5 = arith.addf %4, %3 : vector<2x64x128xf32>
    %c0_6 = arith.constant 0 : index
    %c0_7 = arith.constant 0 : index
    %c0_8 = arith.constant 0 : index
    %6 = vector.load %arg6[%c0_6, %c0_7, %c0_8] : memref<2x64x128xf32, #tpu.memory_space<vmem>>, vector<2x64x128xf32>
    tpu.vector_store %arg6[%c0_6, %c0_7, %c0_8], %5 {strides = array<i32>} : memref<2x64x128xf32, #tpu.memory_space<vmem>>, vector<2x64x128xf32>,
    %c0_9 = arith.constant 0 : index
    %c0_10 = arith.constant 0 : index
    %c0_11 = arith.constant 0 : index
    %7 = vector.load %arg7[%c0_9, %c0_10, %c0_11] : memref<2x64x128xf32, #tpu.memory_space<vmem>>, vector<2x64x128xf32>
    %8 = arith.maximumf %7, %3 : vector<2x64x128xf32>
    %c0_12 = arith.constant 0 : index
    %c0_13 = arith.constant 0 : index
    %c0_14 = arith.constant 0 : index
    %9 = vector.load %arg7[%c0_12, %c0_13, %c0_14] : memref<2x64x128xf32, #tpu.memory_space<vmem>>, vector<2x64x128xf32>
    tpu.vector_store %arg7[%c0_12, %c0_13, %c0_14], %8 {strides = array<i32>} : memref<2x64x128xf32, #tpu.memory_space<vmem>>, vector<2x64x128xf32>,
    %c0_15 = arith.constant 0 : index
    %c0_16 = arith.constant 0 : index
    %c128 = arith.constant 128 : index
    %10 = vector.load %arg2[%c0_15, %c0_16, %c128] : memref<2x64x256xf32, #tpu.memory_space<vmem>>, vector<2x64x128xf32>
    %c0_17 = arith.constant 0 : index
    %c0_18 = arith.constant 0 : index
    %c0_19 = arith.constant 0 : index
    %11 = vector.load %arg6[%c0_17, %c0_18, %c0_19] : memref<2x64x128xf32, #tpu.memory_space<vmem>>, vector<2x64x128xf32>
    %12 = arith.addf %11, %10 : vector<2x64x128xf32>
    %c0_20 = arith.constant 0 : index
    %c0_21 = arith.constant 0 : index
    %c0_22 = arith.constant 0 : index
    %13 = vector.load %arg6[%c0_20, %c0_21, %c0_22] : memref<2x64x128xf32, #tpu.memory_space<vmem>>, vector<2x64x128xf32>
    tpu.vector_store %arg6[%c0_20, %c0_21, %c0_22], %12 {strides = array<i32>} : memref<2x64x128xf32, #tpu.memory_space<vmem>>, vector<2x64x128xf32>,
    %c0_23 = arith.constant 0 : index
    %c0_24 = arith.constant 0 : index
    %c0_25 = arith.constant 0 : index
    %14 = vector.load %arg7[%c0_23, %c0_24, %c0_25] : memref<2x64x128xf32, #tpu.memory_space<vmem>>, vector<2x64x128xf32>
    %15 = arith.maximumf %14, %10 : vector<2x64x128xf32>
    %c0_26 = arith.constant 0 : index
    %c0_27 = arith.constant 0 : index
    %c0_28 = arith.constant 0 : index
    %16 = vector.load %arg7[%c0_26, %c0_27, %c0_28] : memref<2x64x128xf32, #tpu.memory_space<vmem>>, vector<2x64x128xf32>
    tpu.vector_store %arg7[%c0_26, %c0_27, %c0_28], %15 {strides = array<i32>} : memref<2x64x128xf32, #tpu.memory_space<vmem>>, vector<2x64x128xf32>,
    %c0_i32_29 = arith.constant 0 : i32
    %17 = arith.cmpi eq, %arg1, %c0_i32_29 : i32
    %18 = arith.extui %17 : i1 to i32
    %c0_i32_30 = arith.constant 0 : i32
    %19 = arith.cmpi ne, %18, %c0_i32_30 : i32
    scf.if %19 {
      %c0_31 = arith.constant 0 : index
      %c0_32 = arith.constant 0 : index
      %c0_33 = arith.constant 0 : index
      %20 = vector.load %arg6[%c0_31, %c0_32, %c0_33] : memref<2x64x128xf32, #tpu.memory_space<vmem>>, vector<2x64x128xf32>
      %cst = arith.constant dense<0.000000e+00> : vector<2x64xf32>
      %21 = vector.multi_reduction <add>, %20, %cst [2] : vector<2x64x128xf32> to vector<2x64xf32>
      %cst_34 = arith.constant 3.906250e-03 : f32
      %22 = vector.broadcast %cst_34 : f32 to vector<2x64xf32>
      %23 = arith.mulf %21, %22 : vector<2x64xf32>
      %c0_35 = arith.constant 0 : index
      %c0_36 = arith.constant 0 : index
      %c0_37 = arith.constant 0 : index
      %24 = vector.load %arg7[%c0_35, %c0_36, %c0_37] : memref<2x64x128xf32, #tpu.memory_space<vmem>>, vector<2x64x128xf32>
      %cst_38 = arith.constant dense<0xFF800000> : vector<2x64xf32>
      %25 = vector.multi_reduction <maximumf>, %24, %cst_38 [2] : vector<2x64x128xf32> to vector<2x64xf32>
      %26 = tpu.concatenate %23, %25 in 0 : vector<2x64xf32>, vector<2x64xf32> -> vector<4x64xf32>
      %c0_39 = arith.constant 0 : index
      %c0_40 = arith.constant 0 : index
      %27 = vector.load %arg3[%c0_39, %c0_40] : memref<64x4xf32, #tpu.memory_space<vmem>>, vector<64x4xf32>
      %c0_41 = arith.constant 0 : index
      %c0_42 = arith.constant 0 : index
      %28 = vector.load %arg4[%c0_41, %c0_42] : memref<4x64xf32, #tpu.memory_space<vmem>>, vector<4x64xf32>
      %cst_43 = arith.constant dense<0.000000e+00> : vector<4x4xf32>
      %29 = tpu.matmul %26, %27, %cst_43 {dimension_numbers = #tpu.dot_dimension_numbers<[1], [0], [0], [1], [0, 0, 1, 1], [], []>} : vector<4x64xf32>, vector<64x4xf32>, vector<4x4xf32> -> vector<4x4xf32>
      %cst_44 = arith.constant 0.000000e+00 : f32
      %30 = vector.broadcast %cst_44 : f32 to vector<4x4xf32>
      %31 = arith.maximumf %29, %30 : vector<4x4xf32>
      %cst_45 = arith.constant dense<0.000000e+00> : vector<4x64xf32>
      %32 = tpu.matmul %31, %28, %cst_45 {dimension_numbers = #tpu.dot_dimension_numbers<[1], [0], [0], [1], [0, 0, 1, 1], [], []>} : vector<4x4xf32>, vector<4x64xf32>, vector<4x64xf32> -> vector<4x64xf32>
      %33 = vector.extract_strided_slice %32 {offsets = [0, 0], sizes = [2, 64], strides = [1, 1]} : vector<4x64xf32> to vector<2x64xf32>
      %34 = vector.extract_strided_slice %32 {offsets = [2, 0], sizes = [2, 64], strides = [1, 1]} : vector<4x64xf32> to vector<2x64xf32>
      %35 = arith.addf %33, %34 : vector<2x64xf32>
      %36 = arith.negf %35 : vector<2x64xf32>
      %37 = math.exp %36 : vector<2x64xf32>
      %cst_46 = arith.constant 1.000000e+00 : f32
      %38 = vector.broadcast %cst_46 : f32 to vector<2x64xf32>
      %39 = arith.addf %38, %37 : vector<2x64xf32>
      %40 = arith.divf %38, %39 : vector<2x64xf32>
      %41 = vector.shape_cast %40 : vector<2x64xf32> to vector<2x1x64xf32>
      %c0_47 = arith.constant 0 : index
      %c0_48 = arith.constant 0 : index
      %c0_49 = arith.constant 0 : index
      %42 = vector.load %arg5[%c0_47, %c0_48, %c0_49] : memref<2x1x64xf32, #tpu.memory_space<vmem>>, vector<2x1x64xf32>
      tpu.vector_store %arg5[%c0_47, %c0_48, %c0_49], %41 {strides = array<i32>} : memref<2x1x64xf32, #tpu.memory_space<vmem>>, vector<2x1x64xf32>,
    } else {
    }
    return
  }
  func.func @transform_0(%arg0: i32, %arg1: i32) -> (i32, i32, i32) {
    %c0_i32 = arith.constant 0 : i32
    %c0_i32_0 = arith.constant 0 : i32
    return %arg0, %c0_i32, %arg1 : i32, i32, i32
  }
  func.func @transform_1(%arg0: i32, %arg1: i32) -> (i32, i32) {
    %c0_i32 = arith.constant 0 : i32
    %c0_i32_0 = arith.constant 0 : i32
    %c0_i32_1 = arith.constant 0 : i32
    return %c0_i32, %c0_i32_0 : i32, i32
  }
  func.func @transform_2(%arg0: i32, %arg1: i32) -> (i32, i32) {
    %c0_i32 = arith.constant 0 : i32
    %c0_i32_0 = arith.constant 0 : i32
    %c0_i32_1 = arith.constant 0 : i32
    return %c0_i32, %c0_i32_0 : i32, i32
  }
  func.func @transform_3(%arg0: i32, %arg1: i32) -> (i32, i32, i32) {
    %c0_i32 = arith.constant 0 : i32
    %c0_i32_0 = arith.constant 0 : i32
    %c0_i32_1 = arith.constant 0 : i32
    return %arg0, %c0_i32, %c0_i32_0 : i32, i32, i32
  }
}

</mosaic_0001>

<llo_original>
// kernel: tpu_custom_call.1
$region0: #{tpu_custom_call.1}
  #allocation0 [shape = 'u32[]', space=smem, size = 0x4, offset = 0x4, fixed_abs, tag = 'smem constant byte address 0x4 - core index']
  #allocation1 [shape = 'u32[144,128]{1,0:T(1,128)}', space=vmem, size = 0x12000, scoped, tag = 'internal scratch']
  #allocation2 [shape = 'f32[2,64,128]{2,1,0:T(8,128)}', space=vmem, size = 0x10000, scoped, tag = 'scratch operand']
  #allocation3 [shape = 'f32[2,64,128]{2,1,0:T(8,128)}', space=vmem, size = 0x10000, scoped, tag = 'scratch operand']
  %s0 = inlined_call_operand.hbm [shape: f32[2,64,256], index: 0, kind: input, shape index: {}]
  %s1 = inlined_call_operand.vmem [shape: f32[64,4], index: 1, kind: input, shape index: {}]
  %s2 = inlined_call_operand.vmem [shape: f32[4,64], index: 2, kind: input, shape index: {}]
  %s3 = inlined_call_operand.hbm [shape: f32[2,1,64], index: 3, kind: output, shape index: {}]
  %s4 = sld [smem:[#allocation0]]
  $region34: #{tpu_custom_call.1} parent=0
    _
  %s6 = ssub.s32 1, %s4
  %s7 = scalar_select 0, %s6, %s4
  $region1: #{tpu_custom_call.1} parent=0
    #allocation4 [shape = 'u8[131072]{0}', space=vmem, size = 0x20000, scoped, tag = 'input window, operand 0, single buffered']
    #allocation5 [shape = 's32[1]{0}', space=sflag, size = 0x4, scoped, tag = 'scoped memory for tpu_custom_call.1']
    #allocation6 [shape = 's32[1]{0}', space=sflag, size = 0x4, scoped, tag = 'scoped memory for tpu_custom_call.1']
    #allocation7 [shape = 'u8[1024]{0}', space=vmem, size = 0x400, scoped, tag = 'output window, operand 0, single buffered']
    %8 = vsyncpa [#allocation5], 0
    %9 = vsyncpa [#allocation6], 0
    // Predicated region
    $region2: #{tpu_custom_call.1} parent=1 // pred_check
      _
    $region3: #{tpu_custom_call.1} parent=1 // pred_check_branch
      %11 = sbr.rel (0) target = $region5
    $region4: #{tpu_custom_call.1} parent=1 // pred_region
      %s13 = ssub.s32 4096, 4096
      %14 = vsyncadd [#allocation5], %s13
      %s15 = sshll.u32 [#allocation4], 4
      %s16 = int_to_ptr.vmem [resolvable:$true] %s15
      %21 = dma.hbm_to_vmem [thread:$0]  %s0, 4096, %s16, [#allocation5], 256, 256, 16
    $region5: #{tpu_custom_call.1} parent=1 // pred_fallthru
      _
    // Predicated region
    $region6: #{tpu_custom_call.1} parent=1 // pred_check
      _
    $region7: #{tpu_custom_call.1} parent=1 // pred_check_branch
      %23 = sbr.rel (0) target = $region9
    $region8: #{tpu_custom_call.1} parent=1 // pred_region
      _
    $region9: #{tpu_custom_call.1} parent=1 // pred_fallthru
      _
    // Predicated region
    $region10: #{tpu_custom_call.1} parent=1 // pred_check
      _
    $region11: #{tpu_custom_call.1} parent=1 // pred_check_branch
      %25 = sbr.rel (0) target = $region13
    $region12: #{tpu_custom_call.1} parent=1 // pred_region
      _
    $region13: #{tpu_custom_call.1} parent=1 // pred_fallthru
      _
    // Predicated region
    $region14: #{tpu_custom_call.1} parent=1 // pred_check
      _
    $region15: #{tpu_custom_call.1} parent=1 // pred_check_branch
      %27 = sbr.rel (0) target = $region17
    $region16: #{tpu_custom_call.1} parent=1 // pred_region
      %28 = dma.done [#allocation5], 4096
    $region17: #{tpu_custom_call.1} parent=1 // pred_fallthru
      _
    %p29 = scmp.eq.s32.totalorder 0, 0
    // Predicated region
    $region18: #{tpu_custom_call.1} parent=1 // pred_check
      %p30 = pneg %p29
    $region19: #{tpu_custom_call.1} parent=1 // pred_check_branch
      %32 = sbr.rel (%p30) target = $region21
    $region20: #{tpu_custom_call.1} parent=1 // pred_region
      %33 = vst [vmem:[#allocation2] sm:$0xff] 0.0
      %34 = vst [vmem:[#allocation2 + $0x8] sm:$0xff] 0.0
      %35 = vst [vmem:[#allocation2 + $0x10] sm:$0xff] 0.0
      %36 = vst [vmem:[#allocation2 + $0x18] sm:$0xff] 0.0
      %37 = vst [vmem:[#allocation2 + $0x20] sm:$0xff] 0.0
      %38 = vst [vmem:[#allocation2 + $0x28] sm:$0xff] 0.0
      %39 = vst [vmem:[#allocation2 + $0x30] sm:$0xff] 0.0
      %40 = vst [vmem:[#allocation2 + $0x38] sm:$0xff] 0.0
      %41 = vst [vmem:[#allocation2 + $0x40] sm:$0xff] 0.0
      %42 = vst [vmem:[#allocation2 + $0x48] sm:$0xff] 0.0
      %43 = vst [vmem:[#allocation2 + $0x50] sm:$0xff] 0.0
      %44 = vst [vmem:[#allocation2 + $0x58] sm:$0xff] 0.0
      %45 = vst [vmem:[#allocation2 + $0x60] sm:$0xff] 0.0
      %46 = vst [vmem:[#allocation2 + $0x68] sm:$0xff] 0.0
      %47 = vst [vmem:[#allocation2 + $0x70] sm:$0xff] 0.0
      %48 = vst [vmem:[#allocation2 + $0x78] sm:$0xff] 0.0
      %49 = vst [vmem:[#allocation3] sm:$0xff] -inf
      %50 = vst [vmem:[#allocation3 + $0x8] sm:$0xff] -inf
      %51 = vst [vmem:[#allocation3 + $0x10] sm:$0xff] -inf
      %52 = vst [vmem:[#allocation3 + $0x18] sm:$0xff] -inf
      %53 = vst [vmem:[#allocation3 + $0x20] sm:$0xff] -inf
      %54 = vst [vmem:[#allocation3 + $0x28] sm:$0xff] -inf
      %55 = vst [vmem:[#allocation3 + $0x30] sm:$0xff] -inf
      %56 = vst [vmem:[#allocation3 + $0x38] sm:$0xff] -inf
      %57 = vst [vmem:[#allocation3 + $0x40] sm:$0xff] -inf
      %58 = vst [vmem:[#allocation3 + $0x48] sm:$0xff] -inf
      %59 = vst [vmem:[#allocation3 + $0x50] sm:$0xff] -inf
      %60 = vst [vmem:[#allocation3 + $0x58] sm:$0xff] -inf
      %61 = vst [vmem:[#allocation3 + $0x60] sm:$0xff] -inf
      %62 = vst [vmem:[#allocation3 + $0x68] sm:$0xff] -inf
      %63 = vst [vmem:[#allocation3 + $0x70] sm:$0xff] -inf
      %64 = vst [vmem:[#allocation3 + $0x78] sm:$0xff] -inf
    $region21: #{tpu_custom_call.1} parent=1 // pred_fallthru
      _
    %v65 = vld [vmem:[#allocation4] sm:$0xff]
    %v66 = vld [vmem:[#allocation4 + $0x10] sm:$0xff]
    %v67 = vld [vmem:[#allocation4 + $0x20] sm:$0xff]
    %v68 = vld [vmem:[#allocation4 + $0x30] sm:$0xff]
    %v69 = vld [vmem:[#allocation4 + $0x40] sm:$0xff]
    %v70 = vld [vmem:[#allocation4 + $0x50] sm:$0xff]
    %v71 = vld [vmem:[#allocation4 + $0x60] sm:$0xff]
    %v72 = vld [vmem:[#allocation4 + $0x70] sm:$0xff]
    %v73 = vld [vmem:[#allocation4 + $0x80] sm:$0xff]
    %v74 = vld [vmem:[#allocation4 + $0x90] sm:$0xff]
    %v75 = vld [vmem:[#allocation4 + $0xa0] sm:$0xff]
    %v76 = vld [vmem:[#allocation4 + $0xb0] sm:$0xff]
    %v77 = vld [vmem:[#allocation4 + $0xc0] sm:$0xff]
    %v78 = vld [vmem:[#allocation4 + $0xd0] sm:$0xff]
    %v79 = vld [vmem:[#allocation4 + $0xe0] sm:$0xff]
    %v80 = vld [vmem:[#allocation4 + $0xf0] sm:$0xff]
    %v81 = vld [vmem:[#allocation2] sm:$0xff]
    %v82 = vld [vmem:[#allocation2 + $0x8] sm:$0xff]
    %v83 = vld [vmem:[#allocation2 + $0x10] sm:$0xff]
    %v84 = vld [vmem:[#allocation2 + $0x18] sm:$0xff]
    %v85 = vld [vmem:[#allocation2 + $0x20] sm:$0xff]
    %v86 = vld [vmem:[#allocation2 + $0x28] sm:$0xff]
    %v87 = vld [vmem:[#allocation2 + $0x30] sm:$0xff]
    %v88 = vld [vmem:[#allocation2 + $0x38] sm:$0xff]
    %v89 = vld [vmem:[#allocation2 + $0x40] sm:$0xff]
    %v90 = vld [vmem:[#allocation2 + $0x48] sm:$0xff]
    %v91 = vld [vmem:[#allocation2 + $0x50] sm:$0xff]
    %v92 = vld [vmem:[#allocation2 + $0x58] sm:$0xff]
    %v93 = vld [vmem:[#allocation2 + $0x60] sm:$0xff]
    %v94 = vld [vmem:[#allocation2 + $0x68] sm:$0xff]
    %v95 = vld [vmem:[#allocation2 + $0x70] sm:$0xff]
    %v96 = vld [vmem:[#allocation2 + $0x78] sm:$0xff]
    %v97 = vadd.f32 %v81, %v65
    %v98 = vadd.f32 %v82, %v66
    %v99 = vadd.f32 %v83, %v67
    %v100 = vadd.f32 %v84, %v68
    %v101 = vadd.f32 %v85, %v69
    %v102 = vadd.f32 %v86, %v70
    %v103 = vadd.f32 %v87, %v71
    %v104 = vadd.f32 %v88, %v72
    %v105 = vadd.f32 %v89, %v73
    %v106 = vadd.f32 %v90, %v74
    %v107 = vadd.f32 %v91, %v75
    %v108 = vadd.f32 %v92, %v76
    %v109 = vadd.f32 %v93, %v77
    %v110 = vadd.f32 %v94, %v78
    %v111 = vadd.f32 %v95, %v79
    %v112 = vadd.f32 %v96, %v80
    %113 = vst [vmem:[#allocation2] sm:$0xff] %v97
    %114 = vst [vmem:[#allocation2 + $0x8] sm:$0xff] %v98
    %115 = vst [vmem:[#allocation2 + $0x10] sm:$0xff] %v99
    %116 = vst [vmem:[#allocation2 + $0x18] sm:$0xff] %v100
    %117 = vst [vmem:[#allocation2 + $0x20] sm:$0xff] %v101
    %118 = vst [vmem:[#allocation2 + $0x28] sm:$0xff] %v102
    %119 = vst [vmem:[#allocation2 + $0x30] sm:$0xff] %v103
    %120 = vst [vmem:[#allocation2 + $0x38] sm:$0xff] %v104
    %121 = vst [vmem:[#allocation2 + $0x40] sm:$0xff] %v105
    %122 = vst [vmem:[#allocation2 + $0x48] sm:$0xff] %v106
    %123 = vst [vmem:[#allocation2 + $0x50] sm:$0xff] %v107
    %124 = vst [vmem:[#allocation2 + $0x58] sm:$0xff] %v108
    %125 = vst [vmem:[#allocation2 + $0x60] sm:$0xff] %v109
    %126 = vst [vmem:[#allocation2 + $0x68] sm:$0xff] %v110
    %127 = vst [vmem:[#allocation2 + $0x70] sm:$0xff] %v111
    %128 = vst [vmem:[#allocation2 + $0x78] sm:$0xff] %v112
    %v129 = vld [vmem:[#allocation3] sm:$0xff]
    %v130 = vld [vmem:[#allocation3 + $0x8] sm:$0xff]
    %v131 = vld [vmem:[#allocation3 + $0x10] sm:$0xff]
    %v132 = vld [vmem:[#allocation3 + $0x18] sm:$0xff]
    %v133 = vld [vmem:[#allocation3 + $0x20] sm:$0xff]
    %v134 = vld [vmem:[#allocation3 + $0x28] sm:$0xff]
    %v135 = vld [vmem:[#allocation3 + $0x30] sm:$0xff]
    %v136 = vld [vmem:[#allocation3 + $0x38] sm:$0xff]
    %v137 = vld [vmem:[#allocation3 + $0x40] sm:$0xff]
    %v138 = vld [vmem:[#allocation3 + $0x48] sm:$0xff]
    %v139 = vld [vmem:[#allocation3 + $0x50] sm:$0xff]
    %v140 = vld [vmem:[#allocation3 + $0x58] sm:$0xff]
    %v141 = vld [vmem:[#allocation3 + $0x60] sm:$0xff]
    %v142 = vld [vmem:[#allocation3 + $0x68] sm:$0xff]
    %v143 = vld [vmem:[#allocation3 + $0x70] sm:$0xff]
    %v144 = vld [vmem:[#allocation3 + $0x78] sm:$0xff]
    %v145 = vmax.f32 %v129, %v65
    %v146 = vmax.f32 %v130, %v66
    %v147 = vmax.f32 %v131, %v67
    %v148 = vmax.f32 %v132, %v68
    %v149 = vmax.f32 %v133, %v69
    %v150 = vmax.f32 %v134, %v70
    %v151 = vmax.f32 %v135, %v71
    %v152 = vmax.f32 %v136, %v72
    %v153 = vmax.f32 %v137, %v73
    %v154 = vmax.f32 %v138, %v74
    %v155 = vmax.f32 %v139, %v75
    %v156 = vmax.f32 %v140, %v76
    %v157 = vmax.f32 %v141, %v77
    %v158 = vmax.f32 %v142, %v78
    %v159 = vmax.f32 %v143, %v79
    %v160 = vmax.f32 %v144, %v80
    %161 = vst [vmem:[#allocation3] sm:$0xff] %v145
    %162 = vst [vmem:[#allocation3 + $0x8] sm:$0xff] %v146
    %163 = vst [vmem:[#allocation3 + $0x10] sm:$0xff] %v147
    %164 = vst [vmem:[#allocation3 + $0x18] sm:$0xff] %v148
    %165 = vst [vmem:[#allocation3 + $0x20] sm:$0xff] %v149
    %166 = vst [vmem:[#allocation3 + $0x28] sm:$0xff] %v150
    %167 = vst [vmem:[#allocation3 + $0x30] sm:$0xff] %v151
    %168 = vst [vmem:[#allocation3 + $0x38] sm:$0xff] %v152
    %169 = vst [vmem:[#allocation3 + $0x40] sm:$0xff] %v153
    %170 = vst [vmem:[#allocation3 + $0x48] sm:$0xff] %v154
    %171 = vst [vmem:[#allocation3 + $0x50] sm:$0xff] %v155
    %172 = vst [vmem:[#allocation3 + $0x58] sm:$0xff] %v156
    %173 = vst [vmem:[#allocation3 + $0x60] sm:$0xff] %v157
    %174 = vst [vmem:[#allocation3 + $0x68] sm:$0xff] %v158
    %175 = vst [vmem:[#allocation3 + $0x70] sm:$0xff] %v159
    %176 = vst [vmem:[#allocation3 + $0x78] sm:$0xff] %v160
    %v177 = vld [vmem:[#allocation4 + $0x8] sm:$0xff]
    %v178 = vld [vmem:[#allocation4 + $0x18] sm:$0xff]
    %v179 = vld [vmem:[#allocation4 + $0x28] sm:$0xff]
    %v180 = vld [vmem:[#allocation4 + $0x38] sm:$0xff]
    %v181 = vld [vmem:[#allocation4 + $0x48] sm:$0xff]
    %v182 = vld [vmem:[#allocation4 + $0x58] sm:$0xff]
    %v183 = vld [vmem:[#allocation4 + $0x68] sm:$0xff]
    %v184 = vld [vmem:[#allocation4 + $0x78] sm:$0xff]
    %v185 = vld [vmem:[#allocation4 + $0x88] sm:$0xff]
    %v186 = vld [vmem:[#allocation4 + $0x98] sm:$0xff]
    %v187 = vld [vmem:[#allocation4 + $0xa8] sm:$0xff]
    %v188 = vld [vmem:[#allocation4 + $0xb8] sm:$0xff]
    %v189 = vld [vmem:[#allocation4 + $0xc8] sm:$0xff]
    %v190 = vld [vmem:[#allocation4 + $0xd8] sm:$0xff]
    %v191 = vld [vmem:[#allocation4 + $0xe8] sm:$0xff]
    %v192 = vld [vmem:[#allocation4 + $0xf8] sm:$0xff]
    %v193 = vld [vmem:[#allocation2] sm:$0xff]
    %v194 = vld [vmem:[#allocation2 + $0x8] sm:$0xff]
    %v195 = vld [vmem:[#allocation2 + $0x10] sm:$0xff]
    %v196 = vld [vmem:[#allocation2 + $0x18] sm:$0xff]
    %v197 = vld [vmem:[#allocation2 + $0x20] sm:$0xff]
    %v198 = vld [vmem:[#allocation2 + $0x28] sm:$0xff]
    %v199 = vld [vmem:[#allocation2 + $0x30] sm:$0xff]
    %v200 = vld [vmem:[#allocation2 + $0x38] sm:$0xff]
    %v201 = vld [vmem:[#allocation2 + $0x40] sm:$0xff]
    %v202 = vld [vmem:[#allocation2 + $0x48] sm:$0xff]
    %v203 = vld [vmem:[#allocation2 + $0x50] sm:$0xff]
    %v204 = vld [vmem:[#allocation2 + $0x58] sm:$0xff]
    %v205 = vld [vmem:[#allocation2 + $0x60] sm:$0xff]
    %v206 = vld [vmem:[#allocation2 + $0x68] sm:$0xff]
    %v207 = vld [vmem:[#allocation2 + $0x70] sm:$0xff]
    %v208 = vld [vmem:[#allocation2 + $0x78] sm:$0xff]
    %v209 = vadd.f32 %v193, %v177
    %v210 = vadd.f32 %v194, %v178
    %v211 = vadd.f32 %v195, %v179
    %v212 = vadd.f32 %v196, %v180
    %v213 = vadd.f32 %v197, %v181
    %v214 = vadd.f32 %v198, %v182
    %v215 = vadd.f32 %v199, %v183
    %v216 = vadd.f32 %v200, %v184
    %v217 = vadd.f32 %v201, %v185
    %v218 = vadd.f32 %v202, %v186
    %v219 = vadd.f32 %v203, %v187
    %v220 = vadd.f32 %v204, %v188
    %v221 = vadd.f32 %v205, %v189
    %v222 = vadd.f32 %v206, %v190
    %v223 = vadd.f32 %v207, %v191
    %v224 = vadd.f32 %v208, %v192
    %225 = vst [vmem:[#allocation2] sm:$0xff] %v209
    %226 = vst [vmem:[#allocation2 + $0x8] sm:$0xff] %v210
    %227 = vst [vmem:[#allocation2 + $0x10] sm:$0xff] %v211
    %228 = vst [vmem:[#allocation2 + $0x18] sm:$0xff] %v212
    %229 = vst [vmem:[#allocation2 + $0x20] sm:$0xff] %v213
    %230 = vst [vmem:[#allocation2 + $0x28] sm:$0xff] %v214
    %231 = vst [vmem:[#allocation2 + $0x30] sm:$0xff] %v215
    %232 = vst [vmem:[#allocation2 + $0x38] sm:$0xff] %v216
    %233 = vst [vmem:[#allocation2 + $0x40] sm:$0xff] %v217
    %234 = vst [vmem:[#allocation2 + $0x48] sm:$0xff] %v218
    %235 = vst [vmem:[#allocation2 + $0x50] sm:$0xff] %v219
    %236 = vst [vmem:[#allocation2 + $0x58] sm:$0xff] %v220
    %237 = vst [vmem:[#allocation2 + $0x60] sm:$0xff] %v221
    %238 = vst [vmem:[#allocation2 + $0x68] sm:$0xff] %v222
    %239 = vst [vmem:[#allocation2 + $0x70] sm:$0xff] %v223
    %240 = vst [vmem:[#allocation2 + $0x78] sm:$0xff] %v224
    %v241 = vld [vmem:[#allocation3] sm:$0xff]
    %v242 = vld [vmem:[#allocation3 + $0x8] sm:$0xff]
    %v243 = vld [vmem:[#allocation3 + $0x10] sm:$0xff]
    %v244 = vld [vmem:[#allocation3 + $0x18] sm:$0xff]
    %v245 = vld [vmem:[#allocation3 + $0x20] sm:$0xff]
    %v246 = vld [vmem:[#allocation3 + $0x28] sm:$0xff]
    %v247 = vld [vmem:[#allocation3 + $0x30] sm:$0xff]
    %v248 = vld [vmem:[#allocation3 + $0x38] sm:$0xff]
    %v249 = vld [vmem:[#allocation3 + $0x40] sm:$0xff]
    %v250 = vld [vmem:[#allocation3 + $0x48] sm:$0xff]
    %v251 = vld [vmem:[#allocation3 + $0x50] sm:$0xff]
    %v252 = vld [vmem:[#allocation3 + $0x58] sm:$0xff]
    %v253 = vld [vmem:[#allocation3 + $0x60] sm:$0xff]
    %v254 = vld [vmem:[#allocation3 + $0x68] sm:$0xff]
    %v255 = vld [vmem:[#allocation3 + $0x70] sm:$0xff]
    %v256 = vld [vmem:[#allocation3 + $0x78] sm:$0xff]
    %v257 = vmax.f32 %v241, %v177
    %v258 = vmax.f32 %v242, %v178
    %v259 = vmax.f32 %v243, %v179
    %v260 = vmax.f32 %v244, %v180
    %v261 = vmax.f32 %v245, %v181
    %v262 = vmax.f32 %v246, %v182
    %v263 = vmax.f32 %v247, %v183
    %v264 = vmax.f32 %v248, %v184
    %v265 = vmax.f32 %v249, %v185
    %v266 = vmax.f32 %v250, %v186
    %v267 = vmax.f32 %v251, %v187
    %v268 = vmax.f32 %v252, %v188
    %v269 = vmax.f32 %v253, %v189
    %v270 = vmax.f32 %v254, %v190
    %v271 = vmax.f32 %v255, %v191
    %v272 = vmax.f32 %v256, %v192
    %273 = vst [vmem:[#allocation3] sm:$0xff] %v257
    %274 = vst [vmem:[#allocation3 + $0x8] sm:$0xff] %v258
    %275 = vst [vmem:[#allocation3 + $0x10] sm:$0xff] %v259
    %276 = vst [vmem:[#allocation3 + $0x18] sm:$0xff] %v260
    %277 = vst [vmem:[#allocation3 + $0x20] sm:$0xff] %v261
    %278 = vst [vmem:[#allocation3 + $0x28] sm:$0xff] %v262
    %279 = vst [vmem:[#allocation3 + $0x30] sm:$0xff] %v263
    %280 = vst [vmem:[#allocation3 + $0x38] sm:$0xff] %v264
    %281 = vst [vmem:[#allocation3 + $0x40] sm:$0xff] %v265
    %282 = vst [vmem:[#allocation3 + $0x48] sm:$0xff] %v266
    %283 = vst [vmem:[#allocation3 + $0x50] sm:$0xff] %v267
    %284 = vst [vmem:[#allocation3 + $0x58] sm:$0xff] %v268
    %285 = vst [vmem:[#allocation3 + $0x60] sm:$0xff] %v269
    %286 = vst [vmem:[#allocation3 + $0x68] sm:$0xff] %v270
    %287 = vst [vmem:[#allocation3 + $0x70] sm:$0xff] %v271
    %288 = vst [vmem:[#allocation3 + $0x78] sm:$0xff] %v272
    // Predicated region
    $region22: #{tpu_custom_call.1} parent=1 // pred_check
      %p289 = pneg %p29
    $region23: #{tpu_custom_call.1} parent=1 // pred_check_branch
      %291 = sbr.rel (%p289) target = $region25
    $region24: #{tpu_custom_call.1} parent=1 // pred_region
      %v292 = vld [vmem:[#allocation2] sm:$0xff]
      %v293 = vld [vmem:[#allocation2 + $0x8] sm:$0xff]
      %v294 = vld [vmem:[#allocation2 + $0x10] sm:$0xff]
      %v295 = vld [vmem:[#allocation2 + $0x18] sm:$0xff]
      %v296 = vld [vmem:[#allocation2 + $0x20] sm:$0xff]
      %v297 = vld [vmem:[#allocation2 + $0x28] sm:$0xff]
      %v298 = vld [vmem:[#allocation2 + $0x30] sm:$0xff]
      %v299 = vld [vmem:[#allocation2 + $0x38] sm:$0xff]
      %v300 = vld [vmem:[#allocation2 + $0x40] sm:$0xff]
      %v301 = vld [vmem:[#allocation2 + $0x48] sm:$0xff]
      %v302 = vld [vmem:[#allocation2 + $0x50] sm:$0xff]
      %v303 = vld [vmem:[#allocation2 + $0x58] sm:$0xff]
      %v304 = vld [vmem:[#allocation2 + $0x60] sm:$0xff]
      %v305 = vld [vmem:[#allocation2 + $0x68] sm:$0xff]
      %v306 = vld [vmem:[#allocation2 + $0x70] sm:$0xff]
      %v307 = vld [vmem:[#allocation2 + $0x78] sm:$0xff]
      %308 = vadd.xlane.f32.xlu0 %v292
      %v309 = vpop.xlane.xlu0 %308
      %310 = vadd.xlane.f32.xlu0 %v293
      %v311 = vpop.xlane.xlu0 %310
      %312 = vadd.xlane.f32.xlu0 %v294
      %v313 = vpop.xlane.xlu0 %312
      %314 = vadd.xlane.f32.xlu0 %v295
      %v315 = vpop.xlane.xlu0 %314
      %316 = vadd.xlane.f32.xlu0 %v296
      %v317 = vpop.xlane.xlu0 %316
      %318 = vadd.xlane.f32.xlu0 %v297
      %v319 = vpop.xlane.xlu0 %318
      %320 = vadd.xlane.f32.xlu0 %v298
      %v321 = vpop.xlane.xlu0 %320
      %322 = vadd.xlane.f32.xlu0 %v299
      %v323 = vpop.xlane.xlu0 %322
      %324 = vadd.xlane.f32.xlu0 %v300
      %v325 = vpop.xlane.xlu0 %324
      %326 = vadd.xlane.f32.xlu0 %v301
      %v327 = vpop.xlane.xlu0 %326
      %328 = vadd.xlane.f32.xlu0 %v302
      %v329 = vpop.xlane.xlu0 %328
      %330 = vadd.xlane.f32.xlu0 %v303
      %v331 = vpop.xlane.xlu0 %330
      %332 = vadd.xlane.f32.xlu0 %v304
      %v333 = vpop.xlane.xlu0 %332
      %334 = vadd.xlane.f32.xlu0 %v305
      %v335 = vpop.xlane.xlu0 %334
      %336 = vadd.xlane.f32.xlu0 %v306
      %v337 = vpop.xlane.xlu0 %336
      %338 = vadd.xlane.f32.xlu0 %v307
      %v339 = vpop.xlane.xlu0 %338
      %v340 = vmul.f32 %v309, 0.00390625
      %v341 = vmul.f32 %v311, 0.00390625
      %v342 = vmul.f32 %v313, 0.00390625
      %v343 = vmul.f32 %v315, 0.00390625
      %v344 = vmul.f32 %v317, 0.00390625
      %v345 = vmul.f32 %v319, 0.00390625
      %v346 = vmul.f32 %v321, 0.00390625
      %v347 = vmul.f32 %v323, 0.00390625
      %v348 = vmul.f32 %v325, 0.00390625
      %v349 = vmul.f32 %v327, 0.00390625
      %v350 = vmul.f32 %v329, 0.00390625
      %v351 = vmul.f32 %v331, 0.00390625
      %v352 = vmul.f32 %v333, 0.00390625
      %v353 = vmul.f32 %v335, 0.00390625
      %v354 = vmul.f32 %v337, 0.00390625
      %v355 = vmul.f32 %v339, 0.00390625
      %v356 = vld [vmem:[#allocation3] sm:$0xff]
      %v357 = vld [vmem:[#allocation3 + $0x8] sm:$0xff]
      %v358 = vld [vmem:[#allocation3 + $0x10] sm:$0xff]
      %v359 = vld [vmem:[#allocation3 + $0x18] sm:$0xff]
      %v360 = vld [vmem:[#allocation3 + $0x20] sm:$0xff]
      %v361 = vld [vmem:[#allocation3 + $0x28] sm:$0xff]
      %v362 = vld [vmem:[#allocation3 + $0x30] sm:$0xff]
      %v363 = vld [vmem:[#allocation3 + $0x38] sm:$0xff]
      %v364 = vld [vmem:[#allocation3 + $0x40] sm:$0xff]
      %v365 = vld [vmem:[#allocation3 + $0x48] sm:$0xff]
      %v366 = vld [vmem:[#allocation3 + $0x50] sm:$0xff]
      %v367 = vld [vmem:[#allocation3 + $0x58] sm:$0xff]
      %v368 = vld [vmem:[#allocation3 + $0x60] sm:$0xff]
      %v369 = vld [vmem:[#allocation3 + $0x68] sm:$0xff]
      %v370 = vld [vmem:[#allocation3 + $0x70] sm:$0xff]
      %v371 = vld [vmem:[#allocation3 + $0x78] sm:$0xff]
      %372 = vmax.xlane.f32.xlu0 %v356
      %v373 = vpop.xlane.xlu0 %372
      %374 = vmax.xlane.f32.xlu0 %v357
      %v375 = vpop.xlane.xlu0 %374
      %376 = vmax.xlane.f32.xlu0 %v358
      %v377 = vpop.xlane.xlu0 %376
      %378 = vmax.xlane.f32.xlu0 %v359
      %v379 = vpop.xlane.xlu0 %378
      %380 = vmax.xlane.f32.xlu0 %v360
      %v381 = vpop.xlane.xlu0 %380
      %382 = vmax.xlane.f32.xlu0 %v361
      %v383 = vpop.xlane.xlu0 %382
      %384 = vmax.xlane.f32.xlu0 %v362
      %v385 = vpop.xlane.xlu0 %384
      %386 = vmax.xlane.f32.xlu0 %v363
      %v387 = vpop.xlane.xlu0 %386
      %388 = vmax.xlane.f32.xlu0 %v364
      %v389 = vpop.xlane.xlu0 %388
      %390 = vmax.xlane.f32.xlu0 %v365
      %v391 = vpop.xlane.xlu0 %390
      %392 = vmax.xlane.f32.xlu0 %v366
      %v393 = vpop.xlane.xlu0 %392
      %394 = vmax.xlane.f32.xlu0 %v367
      %v395 = vpop.xlane.xlu0 %394
      %396 = vmax.xlane.f32.xlu0 %v368
      %v397 = vpop.xlane.xlu0 %396
      %398 = vmax.xlane.f32.xlu0 %v369
      %v399 = vpop.xlane.xlu0 %398
      %400 = vmax.xlane.f32.xlu0 %v370
      %v401 = vpop.xlane.xlu0 %400
      %402 = vmax.xlane.f32.xlu0 %v371
      %v403 = vpop.xlane.xlu0 %402
      %v420 = vlaneseq
      %v421 = vand.u32 %v420, 127
      %v422 = vlaneseq
      %v423 = vshrl.u32 %v422, 7
      %v424 = vsub.s32 %v421, %v423
      %v425 = vrot.slane %v340, %v424
      %v426 = vadd.s32 %v421, 4294967288
      %v427 = vlaneseq
      %v428 = vshrl.u32 %v427, 7
      %v429 = vsub.s32 %v426, %v428
      %v430 = vrot.slane %v341, %v429
      %vm431 = vcmask 130112
      %v432 = vsel %vm431, %v430, %v425
      %v433 = vadd.s32 %v421, 4294967280
      %v434 = vlaneseq
      %v435 = vshrl.u32 %v434, 7
      %v436 = vsub.s32 %v433, %v435
      %v437 = vrot.slane %v342, %v436
      %vm438 = vcmask 195712
      %v439 = vsel %vm438, %v437, %v432
      %v440 = vadd.s32 %v421, 4294967272
      %v441 = vlaneseq
      %v442 = vshrl.u32 %v441, 7
      %v443 = vsub.s32 %v440, %v442
      %v444 = vrot.slane %v343, %v443
      %vm445 = vcmask 261312
      %v446 = vsel %vm445, %v444, %v439
      %v447 = vadd.s32 %v421, 4294967264
      %v448 = vlaneseq
      %v449 = vshrl.u32 %v448, 7
      %v450 = vsub.s32 %v447, %v449
      %v451 = vrot.slane %v344, %v450
      %vm452 = vcmask 326912
      %v453 = vsel %vm452, %v451, %v446
      %v454 = vadd.s32 %v421, 4294967256
      %v455 = vlaneseq
      %v456 = vshrl.u32 %v455, 7
      %v457 = vsub.s32 %v454, %v456
      %v458 = vrot.slane %v345, %v457
      %vm459 = vcmask 392512
      %v460 = vsel %vm459, %v458, %v453
      %v461 = vadd.s32 %v421, 4294967248
      %v462 = vlaneseq
      %v463 = vshrl.u32 %v462, 7
      %v464 = vsub.s32 %v461, %v463
      %v465 = vrot.slane %v346, %v464
      %vm466 = vcmask 458112
      %v467 = vsel %vm466, %v465, %v460
      %v468 = vadd.s32 %v421, 4294967240
      %v469 = vlaneseq
      %v470 = vshrl.u32 %v469, 7
      %v471 = vsub.s32 %v468, %v470
      %v472 = vrot.slane %v347, %v471
      %vm473 = vcmask 523712
      %v474 = vsel %vm473, %v472, %v467
      %v475 = vlaneseq
      %v476 = vshrl.u32 %v475, 7
      %v477 = vsub.s32 %v421, %v476
      %v478 = vrot.slane %v348, %v477
      %v479 = vlaneseq
      %v480 = vshrl.u32 %v479, 7
      %v481 = vsub.s32 %v426, %v480
      %v482 = vrot.slane %v349, %v481
      %v483 = vsel %vm431, %v482, %v478
      %v484 = vlaneseq
      %v485 = vshrl.u32 %v484, 7
      %v486 = vsub.s32 %v433, %v485
      %v487 = vrot.slane %v350, %v486
      %v488 = vsel %vm438, %v487, %v483
      %v489 = vlaneseq
      %v490 = vshrl.u32 %v489, 7
      %v491 = vsub.s32 %v440, %v490
      %v492 = vrot.slane %v351, %v491
      %v493 = vsel %vm445, %v492, %v488
      %v494 = vlaneseq
      %v495 = vshrl.u32 %v494, 7
      %v496 = vsub.s32 %v447, %v495
      %v497 = vrot.slane %v352, %v496
      %v498 = vsel %vm452, %v497, %v493
      %v499 = vlaneseq
      %v500 = vshrl.u32 %v499, 7
      %v501 = vsub.s32 %v454, %v500
      %v502 = vrot.slane %v353, %v501
      %v503 = vsel %vm459, %v502, %v498
      %v504 = vlaneseq
      %v505 = vshrl.u32 %v504, 7
      %v506 = vsub.s32 %v461, %v505
      %v507 = vrot.slane %v354, %v506
      %v508 = vsel %vm466, %v507, %v503
      %v509 = vlaneseq
      %v510 = vshrl.u32 %v509, 7
      %v511 = vsub.s32 %v468, %v510
      %v512 = vrot.slane %v355, %v511
      %v513 = vsel %vm473, %v512, %v508
      %vm514 = vcmask 1041409
      %v515 = vsel %vm514, %v513, %v474
      %v533 = vlaneseq
      %v534 = vshrl.u32 %v533, 7
      %v535 = vsub.s32 %v421, %v534
      %v536 = vrot.slane %v373, %v535
      %v537 = vlaneseq
      %v538 = vshrl.u32 %v537, 7
      %v539 = vsub.s32 %v426, %v538
      %v540 = vrot.slane %v375, %v539
      %v541 = vsel %vm431, %v540, %v536
      %v542 = vlaneseq
      %v543 = vshrl.u32 %v542, 7
      %v544 = vsub.s32 %v433, %v543
      %v545 = vrot.slane %v377, %v544
      %v546 = vsel %vm438, %v545, %v541
      %v547 = vlaneseq
      %v548 = vshrl.u32 %v547, 7
      %v549 = vsub.s32 %v440, %v548
      %v550 = vrot.slane %v379, %v549
      %v551 = vsel %vm445, %v550, %v546
      %v552 = vlaneseq
      %v553 = vshrl.u32 %v552, 7
      %v554 = vsub.s32 %v447, %v553
      %v555 = vrot.slane %v381, %v554
      %v556 = vsel %vm452, %v555, %v551
      %v557 = vlaneseq
      %v558 = vshrl.u32 %v557, 7
      %v559 = vsub.s32 %v454, %v558
      %v560 = vrot.slane %v383, %v559
      %v561 = vsel %vm459, %v560, %v556
      %v562 = vlaneseq
      %v563 = vshrl.u32 %v562, 7
      %v564 = vsub.s32 %v461, %v563
      %v565 = vrot.slane %v385, %v564
      %v566 = vsel %vm466, %v565, %v561
      %v567 = vlaneseq
      %v568 = vshrl.u32 %v567, 7
      %v569 = vsub.s32 %v468, %v568
      %v570 = vrot.slane %v387, %v569
      %v571 = vsel %vm473, %v570, %v566
      %v572 = vlaneseq
      %v573 = vshrl.u32 %v572, 7
      %v574 = vsub.s32 %v421, %v573
      %v575 = vrot.slane %v389, %v574
      %v576 = vlaneseq
      %v577 = vshrl.u32 %v576, 7
      %v578 = vsub.s32 %v426, %v577
      %v579 = vrot.slane %v391, %v578
      %v580 = vsel %vm431, %v579, %v575
      %v581 = vlaneseq
      %v582 = vshrl.u32 %v581, 7
      %v583 = vsub.s32 %v433, %v582
      %v584 = vrot.slane %v393, %v583
      %v585 = vsel %vm438, %v584, %v580
      %v586 = vlaneseq
      %v587 = vshrl.u32 %v586, 7
      %v588 = vsub.s32 %v440, %v587
      %v589 = vrot.slane %v395, %v588
      %v590 = vsel %vm445, %v589, %v585
      %v591 = vlaneseq
      %v592 = vshrl.u32 %v591, 7
      %v593 = vsub.s32 %v447, %v592
      %v594 = vrot.slane %v397, %v593
      %v595 = vsel %vm452, %v594, %v590
      %v596 = vlaneseq
      %v597 = vshrl.u32 %v596, 7
      %v598 = vsub.s32 %v454, %v597
      %v599 = vrot.slane %v399, %v598
      %v600 = vsel %vm459, %v599, %v595
      %v601 = vlaneseq
      %v602 = vshrl.u32 %v601, 7
      %v603 = vsub.s32 %v461, %v602
      %v604 = vrot.slane %v401, %v603
      %v605 = vsel %vm466, %v604, %v600
      %v606 = vlaneseq
      %v607 = vshrl.u32 %v606, 7
      %v608 = vsub.s32 %v468, %v607
      %v609 = vrot.slane %v403, %v608
      %v610 = vsel %vm473, %v609, %v605
      %vm611 = vcmask 1043459
      %v612 = vsel %vm611, %v610, %v571
      %vm614 = vcmask 1041408
      %v615 = vsel %vm614, %v515, %v612
      %v616 = vld [vmem:[%s1] sm:$0xff]
      %v617 = vld [vmem:[%s1 + $0x8] sm:$0xff]
      %v618 = vld [vmem:[%s1 + $0x10] sm:$0xff]
      %v619 = vld [vmem:[%s1 + $0x18] sm:$0xff]
      %v620 = vld [vmem:[%s1 + $0x20] sm:$0xff]
      %v621 = vld [vmem:[%s1 + $0x28] sm:$0xff]
      %v622 = vld [vmem:[%s1 + $0x30] sm:$0xff]
      %v623 = vld [vmem:[%s1 + $0x38] sm:$0xff]
      %v624 = vld [vmem:[%s2] sm:$0xf]
      %vm625 = vcmask 523264
      %v627 = vsel %vm625, %v615, 0
      %629 = vmatprep.subr.mxu0 0.0
      %630 = vmatpush1.msra.mxu0 0.0
      %631 = vmatprep.subr.mxu0 0.0
      %632 = vmatpush1.msra.mxu0 0.0
      %633 = vmatprep.subr.mxu0 0.0
      %634 = vmatpush1.msra.mxu0 0.0
      %635 = vmatprep.subr.mxu0 0.0
      %636 = vmatpush1.msra.mxu0 0.0
      %637 = vmatprep.subr.mxu0 0.0
      %638 = vmatpush1.msra.mxu0 0.0
      %639 = vmatprep.subr.mxu0 0.0
      %640 = vmatpush1.msra.mxu0 0.0
      %641 = vmatprep.subr.mxu0 0.0
      %642 = vmatpush1.msra.mxu0 0.0
      %643 = vmatprep.subr.mxu0 0.0
      %644 = vmatpush1.msra.mxu0 0.0
      %645 = vmatprep.subr.mxu0 0.0
      %646 = vmatpush1.msra.mxu0 %v623
      %647 = vmatprep.subr.mxu0 0.0
      %648 = vmatpush1.msra.mxu0 %v622
      %649 = vmatprep.subr.mxu0 0.0
      %650 = vmatpush1.msra.mxu0 %v621
      %651 = vmatprep.subr.mxu0 0.0
      %652 = vmatpush1.msra.mxu0 %v620
      %653 = vmatprep.subr.mxu0 0.0
      %654 = vmatpush1.msra.mxu0 %v619
      %655 = vmatprep.subr.mxu0 0.0
      %656 = vmatpush1.msra.mxu0 %v618
      %657 = vmatprep.subr.mxu0 0.0
      %658 = vmatpush1.msra.mxu0 %v617
      %659 = vmatprep.subr.mxu0 0.0
      %660 = vmatpush1.msra.mxu0 %v616
      %661 = vmatprep.subr.mxu0 0.0
      %662 = vmatpush2.msra.mxu0 0.0
      %663 = vmatprep.subr.mxu0 0.0
      %664 = vmatpush2.msra.mxu0 0.0
      %665 = vmatprep.subr.mxu0 0.0
      %666 = vmatpush2.msra.mxu0 0.0
      %667 = vmatprep.subr.mxu0 0.0
      %668 = vmatpush2.msra.mxu0 0.0
      %669 = vmatprep.subr.mxu0 0.0
      %670 = vmatpush2.msra.mxu0 0.0
      %671 = vmatprep.subr.mxu0 0.0
      %672 = vmatpush2.msra.mxu0 0.0
      %673 = vmatprep.subr.mxu0 0.0
      %674 = vmatpush2.msra.mxu0 0.0
      %675 = vmatprep.subr.mxu0 0.0
      %676 = vmatpush2.msra.mxu0 0.0
      %677 = vmatprep.subr.mxu0 0.0
      %678 = vmatpush2.msra.mxu0 0.0
      %679 = vmatprep.subr.mxu0 0.0
      %680 = vmatpush2.msra.mxu0 0.0
      %681 = vmatprep.subr.mxu0 0.0
      %682 = vmatpush2.msra.mxu0 0.0
      %683 = vmatprep.subr.mxu0 0.0
      %684 = vmatpush2.msra.mxu0 0.0
      %685 = vmatprep.subr.mxu0 0.0
      %686 = vmatpush2.msra.mxu0 0.0
      %687 = vmatprep.subr.mxu0 0.0
      %688 = vmatpush2.msra.mxu0 0.0
      %689 = vmatprep.subr.mxu0 0.0
      %690 = vmatpush2.msra.mxu0 0.0
      %691 = vmatprep.subr.mxu0 0.0
      %692 = vmatpush2.msra.mxu0 0.0
      %693 = vmatprep.mubr.f32.mxu0 0.0
      %694 = vmatmul.mubr.f32.gmra.mxu0 %v627
      %v695 = vpop.f32.mrf.mxu0
      %v696 = vadd.f32 0.0, %v695
      %v697 = vpop.f32.mrf.mxu0
      %698 = vdwg.mxu0
      %v699 = vmax.f32 %v696, 0.0
      %vm700 = vcmask 31744
      %v702 = vsel %vm700, %v699, 0
      %vm704 = vcmask 1043456
      %v706 = vsel %vm704, %v624, 0
      %708 = vmatprep.subr.mxu0 0.0
      %709 = vmatpush1.msra.mxu0 0.0
      %710 = vmatprep.subr.mxu0 0.0
      %711 = vmatpush1.msra.mxu0 0.0
      %712 = vmatprep.subr.mxu0 0.0
      %713 = vmatpush1.msra.mxu0 0.0
      %714 = vmatprep.subr.mxu0 0.0
      %715 = vmatpush1.msra.mxu0 0.0
      %716 = vmatprep.subr.mxu0 0.0
      %717 = vmatpush1.msra.mxu0 0.0
      %718 = vmatprep.subr.mxu0 0.0
      %719 = vmatpush1.msra.mxu0 0.0
      %720 = vmatprep.subr.mxu0 0.0
      %721 = vmatpush1.msra.mxu0 0.0
      %722 = vmatprep.subr.mxu0 0.0
      %723 = vmatpush1.msra.mxu0 0.0
      %724 = vmatprep.subr.mxu0 0.0
      %725 = vmatpush1.msra.mxu0 0.0
      %726 = vmatprep.subr.mxu0 0.0
      %727 = vmatpush1.msra.mxu0 0.0
      %728 = vmatprep.subr.mxu0 0.0
      %729 = vmatpush1.msra.mxu0 0.0
      %730 = vmatprep.subr.mxu0 0.0
      %731 = vmatpush1.msra.mxu0 0.0
      %732 = vmatprep.subr.mxu0 0.0
      %733 = vmatpush1.msra.mxu0 0.0
      %734 = vmatprep.subr.mxu0 0.0
      %735 = vmatpush1.msra.mxu0 0.0
      %736 = vmatprep.subr.mxu0 0.0
      %737 = vmatpush1.msra.mxu0 0.0
      %738 = vmatprep.subr.mxu0 0.0
      %739 = vmatpush1.msra.mxu0 %v706
      %740 = vmatprep.subr.mxu0 0.0
      %741 = vmatpush2.msra.mxu0 0.0
      %742 = vmatprep.subr.mxu0 0.0
      %743 = vmatpush2.msra.mxu0 0.0
      %744 = vmatprep.subr.mxu0 0.0
      %745 = vmatpush2.msra.mxu0 0.0
      %746 = vmatprep.subr.mxu0 0.0
      %747 = vmatpush2.msra.mxu0 0.0
      %748 = vmatprep.subr.mxu0 0.0
      %749 = vmatpush2.msra.mxu0 0.0
      %750 = vmatprep.subr.mxu0 0.0
      %751 = vmatpush2.msra.mxu0 0.0
      %752 = vmatprep.subr.mxu0 0.0
      %753 = vmatpush2.msra.mxu0 0.0
      %754 = vmatprep.subr.mxu0 0.0
      %755 = vmatpush2.msra.mxu0 0.0
      %756 = vmatprep.subr.mxu0 0.0
      %757 = vmatpush2.msra.mxu0 0.0
      %758 = vmatprep.subr.mxu0 0.0
      %759 = vmatpush2.msra.mxu0 0.0
      %760 = vmatprep.subr.mxu0 0.0
      %761 = vmatpush2.msra.mxu0 0.0
      %762 = vmatprep.subr.mxu0 0.0
      %763 = vmatpush2.msra.mxu0 0.0
      %764 = vmatprep.subr.mxu0 0.0
      %765 = vmatpush2.msra.mxu0 0.0
      %766 = vmatprep.subr.mxu0 0.0
      %767 = vmatpush2.msra.mxu0 0.0
      %768 = vmatprep.subr.mxu0 0.0
      %769 = vmatpush2.msra.mxu0 0.0
      %770 = vmatprep.subr.mxu0 0.0
      %771 = vmatpush2.msra.mxu0 0.0
      %772 = vmatprep.mubr.f32.mxu0 0.0
      %773 = vmatmul.mubr.f32.gmra.mxu0 %v702
      %v774 = vpop.f32.mrf.mxu0
      %v775 = vadd.f32 0.0, %v774
      %v776 = vpop.f32.mrf.mxu0
      %777 = vdwg.mxu0
      %v779 = vrot.slane %v775, 2
      %v781 = vadd.f32 %v775, %v779
      %v782 = vxor.u32 %v781, 2147483648
      %v783 = vmul.f32 %v782, 1.442695
      %v784 = vpow.pop %v783
      %v785 = vadd.f32 %v784, 1.0
      %v786 = vrcp.pop %v785
      %v787 = vmul.f32 1.0, %v786
      %v790 = vunpack.c.l.s4 1966171168
      %v791 = vunpack.c.0.s8 %v790
      %v792 = vlaneseq
      %v793 = vshrl.u32 %v792, 7
      %v794 = vsub.s32 %v791, %v793
      %v795 = vrot.slane %v787, %v794
      %v796 = vcombine.high %v795, %v795
      %v798 = vunpack.c.l.s4 1966171168
      %v799 = vunpack.c.0.s8 %v798
      %v800 = vlaneseq
      %v801 = vshrl.u32 %v800, 7
      %v802 = vsub.s32 %v799, %v801
      %v803 = vrot.slane %v795, %v802
      %v805 = vunpack.c.l.s4 1966171168
      %v806 = vunpack.c.0.s8 %v805
      %v807 = vlaneseq
      %v808 = vshrl.u32 %v807, 7
      %v809 = vsub.s32 %v806, %v808
      %v810 = vrot.slane %v796, %v809
      %vm813 = vcmask 516096
      %814 = vst.msk [vmem:[#allocation7] sm:$0x1] %vm813, %v803
      %815 = vst.msk [vmem:[#allocation7 + $0x1] sm:$0x1] %vm813, %v810
    $region25: #{tpu_custom_call.1} parent=1 // pred_fallthru
      _
    // Predicated region
    $region26: #{tpu_custom_call.1} parent=1 // pred_check
      _
    $region27: #{tpu_custom_call.1} parent=1 // pred_check_branch
      %817 = sbr.rel (0) target = $region29
    $region28: #{tpu_custom_call.1} parent=1 // pred_region
      %s819 = ssub.s32 32, 32
      %820 = vsyncadd [#allocation6], %s819
      %s821 = sshll.u32 [#allocation7], 4
      %s822 = int_to_ptr.vmem [resolvable:$true] %s821
      %827 = dma.vmem_to_hbm [thread:$0]  %s822, 32, %s3, [#allocation6], 16, 16, 1
    $region29: #{tpu_custom_call.1} parent=1 // pred_fallthru
      _
    // Predicated region
    $region30: #{tpu_custom_call.1} parent=1 // pred_check
      _
    $region31: #{tpu_custom_call.1} parent=1 // pred_check_branch
      %829 = sbr.rel (0) target = $region33
    $region32: #{tpu_custom_call.1} parent=1 // pred_region
      %830 = dma.done [#allocation6], 32
    $region33: #{tpu_custom_call.1} parent=1 // pred_fallthru
      _
    %831 = vsyncpa [#allocation5], 1
    %832 = vsyncpa [#allocation6], 1

</llo_original>
